<compile_context>
chip_gen: v6e
topology: v6e:2x2x1
jax: 0.10.0
libtpu: 0.0.40
codegen_flags: <defaults>
</compile_context>

<pallas_src>
import functools

import jax
import jax.numpy as jnp
from jax import lax
from jax.experimental import pallas as pl
from jax.experimental.pallas import tpu as pltpu


_LANES = 128
_TARGET_BLOCK_BYTES = 4 * 1024 * 1024     # ~4 MiB blocks (v6e/v7x roofline sweet spot)
_FUSED_MAX_BYTES = 2 * 1024 * 1024        # fused single-pass threshold (padded x bytes)
_VMEM_CAP_BYTES = 48 * 1024 * 1024        # stay well inside v7x's 64 MiB physical VMEM
_VMEM_FLOOR_BYTES = 16 * 1024 * 1024


def _round_up(x, m):
    return (x + m - 1) // m * m


def _largest_divisor_leq(n, cap):
    cap = max(1, min(cap, n))
    for d in range(cap, 0, -1):
        if n % d == 0:
            return d
    return 1


def _sublane_pad(c, itemsize):
    # f32 pads C to 8 sublanes, bf16 to 16, 8-bit to 32.
    return _round_up(c, max(8, 32 // itemsize))


def _vmem_limit(*live_bytes):
    need = int(sum(live_bytes))
    return int(max(_VMEM_FLOOR_BYTES,
                   min(need + need // 4 + (2 << 20), _VMEM_CAP_BYTES)))


def _choose_tiles(n, c, hw, dtype):
    """Pick (tile_n, tile_hw, c_pad) for blocks of shape (tile_n, C, tile_hw).

    Block bytes are estimated with C padded to the sublane granularity and the
    lane dim padded to 128 (actual VMEM footprint, not logical size)."""
    itemsize = jnp.dtype(dtype).itemsize
    c_pad = _sublane_pad(c, itemsize)
    hw_pad = _round_up(hw, _LANES)
    row_bytes = c_pad * hw_pad * itemsize
    if row_bytes <= _TARGET_BLOCK_BYTES:
        # Whole spatial row fits: grow over the batch dim, but keep >=2 grid
        # steps on the parallel (batch) axis so both v7x TensorCores get work.
        tile_hw = hw
        cap = _TARGET_BLOCK_BYTES // row_bytes
        if n >= 2:
            cap = min(cap, n // 2)
        tile_n = _largest_divisor_leq(n, cap)
    else:
        tile_n = 1
        lane_cap = (_TARGET_BLOCK_BYTES // (c_pad * itemsize)) // _LANES * _LANES
        tile_hw = min(max(_LANES, lane_cap), hw)
    return tile_n, tile_hw, c_pad


# ---------------------------------------------------------------------------
# Pass 1: partial per-channel |x| max (training only).
# ---------------------------------------------------------------------------
def _partial_absmax_kernel(x_ref, pmax_ref, acc_ref, *, tile_hw, hw_total,
                           ragged, stream, unroll):
    j = pl.program_id(1)

    @pl.when(j == 0)
    def _():
        acc_ref[...] = jnp.zeros_like(acc_ref)

    if stream:
        # Stream 128-lane chunks straight from the ref: no full-tile VMEM
        # temporary, bounded live ranges (fori_loop), pure VPU maxes into the
        # lane-wide accumulator.
        n_chunks = tile_hw // _LANES

        def body(k, carry):
            off = pl.multiple_of(k * _LANES, _LANES)
            chunk = x_ref[:, :, pl.ds(off, _LANES)]          # (tile_n, C, 128)
            a = jnp.abs(chunk).astype(jnp.float32)
            if a.shape[0] == 1:
                a = a.reshape(a.shape[1:])                    # (C, 128)
            else:
                a = jnp.max(a, axis=0)
            if ragged:
                lanes = lax.broadcasted_iota(jnp.int32, a.shape, 1)
                pos = j * tile_hw + off + lanes
                a = jnp.where(pos < hw_total, a, 0.0)         # abs >= 0: mask to 0
            acc_ref[...] = jnp.maximum(acc_ref[...], a)
            return carry

        lax.fori_loop(0, n_chunks, body, 0, unroll=unroll)
    else:
        # Small, non-lane-aligned full row (tile_hw == HW): whole-tile reduce.
        a = jnp.abs(x_ref[...]).astype(jnp.float32)
        if a.shape[0] == 1:
            a = a.reshape(a.shape[1:])
        else:
            a = jnp.max(a, axis=0)
        acc_ref[...] = jnp.maximum(acc_ref[...],
                                   jnp.max(a, axis=-1, keepdims=True))

    @pl.when(j == pl.num_programs(1) - 1)
    def _():
        # Single cross-lane reduce (XLU, free slot); tiny (C, 1) writeback.
        pmax_ref[...] = jnp.max(acc_ref[...], axis=-1, keepdims=True)


# ---------------------------------------------------------------------------
# Pass 2: broadcast multiply by the per-channel f32 reciprocal.
# ---------------------------------------------------------------------------
def _normalize_kernel(x_ref, inv_rm_ref, o_ref):
    o_ref[...] = (x_ref[...] * inv_rm_ref[...]).astype(o_ref.dtype)


# ---------------------------------------------------------------------------
# Fused single-pass kernel for tensors that fit comfortably in VMEM.
# ---------------------------------------------------------------------------
def _fused_kernel(x_ref, rm_ref, o_ref, new_rm_ref, *, value, eps, momentum,
                  training):
    x = x_ref[...]                                            # (N, C, HW)
    rm = rm_ref[...]                                          # (C, 1) f32
    if training:
        a = jnp.abs(x).astype(jnp.float32)
        a = jnp.max(a, axis=0)                                # (C, HW)
        ch = jnp.max(a, axis=-1, keepdims=True)               # (C, 1)
        ch = jnp.maximum(ch / value, eps)
        rm = rm * (1.0 - momentum) + momentum * ch
    new_rm_ref[...] = rm
    inv = 1.0 / rm                                            # (C, 1) f32
    o_ref[...] = (x * inv[None, :, :]).astype(o_ref.dtype)


def _two_pass(x3, rm, *, value, eps, momentum, training):
    N, C, HW = x3.shape
    dtype = x3.dtype
    itemsize = jnp.dtype(dtype).itemsize
    tile_n, tile_hw, c_pad = _choose_tiles(N, C, HW, dtype)
    grid = (N // tile_n, pl.cdiv(HW, tile_hw))
    tile_hw_pad = _round_up(tile_hw, _LANES)
    block_bytes = tile_n * c_pad * tile_hw_pad * itemsize
    col_bytes = c_pad * _LANES * 4            # (C, 1) buffers pad to 128 lanes

    if training:
        stream = (tile_hw % _LANES == 0)
        ragged = (HW % tile_hw != 0)
        n_chunks = tile_hw // _LANES if stream else 0
        unroll = max(1, min(8, n_chunks))

        pmax = pl.pallas_call(
            functools.partial(_partial_absmax_kernel, tile_hw=tile_hw,
                              hw_total=HW, ragged=ragged, stream=stream,
                              unroll=unroll),
            out_shape=jax.ShapeDtypeStruct((grid[0], C, 1), jnp.float32),
            grid_spec=pltpu.PrefetchScalarGridSpec(
                num_scalar_prefetch=0,
                grid=grid,
                in_specs=[pl.BlockSpec((tile_n, C, tile_hw),
                                       lambda n, j: (n, 0, j))],
                out_specs=pl.BlockSpec((None, C, 1),
                                       lambda n, j: (n, 0, 0)),
                scratch_shapes=[pltpu.VMEM((C, _LANES), jnp.float32)]),
            compiler_params=pltpu.CompilerParams(
                dimension_semantics=("parallel", "arbitrary"),
                vmem_limit_bytes=_vmem_limit(2 * block_bytes, 3 * col_bytes)),
        )(x3)

        # Tiny O(C) epilogue: combine partial maxes, clamp, EMA.  Left to XLA.
        # TODO(synk): fold this + the reciprocal into pass 2's first grid step.
        ch_max = jnp.max(pmax[:, :, 0], axis=0)
        ch_max = jnp.maximum(ch_max / value, eps)
        new_rm = rm * (1.0 - momentum) + momentum * ch_max
    else:
        new_rm = rm

    # f32 reciprocal (matches the reference, which divides by the f32 buffer);
    # the per-element divide becomes a broadcast multiply.
    inv_rm = (1.0 / new_rm).reshape(C, 1)

    out3 = pl.pallas_call(
        _normalize_kernel,
        out_shape=jax.ShapeDtypeStruct((N, C, HW), dtype),
        grid_spec=pltpu.PrefetchScalarGridSpec(
            num_scalar_prefetch=0,
            grid=grid,
            in_specs=[pl.BlockSpec((tile_n, C, tile_hw),
                                   lambda n, j: (n, 0, j)),
                      pl.BlockSpec((C, 1), lambda n, j: (0, 0))],
            out_specs=pl.BlockSpec((tile_n, C, tile_hw),
                                   lambda n, j: (n, 0, j))),
        compiler_params=pltpu.CompilerParams(
            dimension_semantics=("parallel", "parallel"),
            vmem_limit_bytes=_vmem_limit(4 * block_bytes, 2 * col_bytes)),
    )(x3, inv_rm)

    return out3, new_rm


def norm_absmax2d(x_nchw, running_max, *, value, eps=0.01, momentum=0.01,
                  training=True, use_fused=None):
    """Pallas implementation of NormAbsMax2d.forward.

    Returns (out_nchw, new_running_max); new_running_max is float32 (the
    in-place buffer mutation of the PyTorch module is returned functionally)."""
    N, C, H, W = x_nchw.shape
    HW = H * W
    x3 = x_nchw.reshape(N, C, HW)                 # free reshape, no transpose
    rm = running_max.astype(jnp.float32)

    itemsize = jnp.dtype(x3.dtype).itemsize
    c_pad = _sublane_pad(C, itemsize)
    hw_pad = _round_up(HW, _LANES)
    x_pad_bytes = N * c_pad * hw_pad * itemsize
    if use_fused is None:
        use_fused = x_pad_bytes <= _FUSED_MAX_BYTES

    if use_fused:
        fused_limit = _vmem_limit(2 * x_pad_bytes,             # x in + out
                                  2 * N * c_pad * hw_pad * 4,  # f32 temporaries
                                  4 * c_pad * _LANES * 4)
        out3, new_rm2 = pl.pallas_call(
            functools.partial(_fused_kernel, value=value, eps=eps,
                              momentum=momentum, training=training),
            out_shape=(jax.ShapeDtypeStruct((N, C, HW), x3.dtype),
                       jax.ShapeDtypeStruct((C, 1), jnp.float32)),
            grid_spec=pltpu.PrefetchScalarGridSpec(
                num_scalar_prefetch=0,
                grid=(1,),
                in_specs=[pl.BlockSpec((N, C, HW), lambda i: (0, 0, 0)),
                          pl.BlockSpec((C, 1), lambda i: (0, 0))],
                out_specs=[pl.BlockSpec((N, C, HW), lambda i: (0, 0, 0)),
                           pl.BlockSpec((C, 1), lambda i: (0, 0))]),
            compiler_params=pltpu.CompilerParams(
                dimension_semantics=("arbitrary",),
                vmem_limit_bytes=fused_limit),
        )(x3, rm.reshape(C, 1))
        new_rm = new_rm2.reshape(C)
    else:
        out3, new_rm = _two_pass(x3, rm, value=value, eps=eps,
                                 momentum=momentum, training=training)

    return out3.reshape(N, C, H, W), new_rm


def _reference(x, running_max, value, eps, momentum):
    ch_max = jnp.max(jnp.abs(x), axis=(0, 2, 3))
    ch_max = jnp.maximum(ch_max / value, eps)
    new_rm = running_max * (1.0 - momentum) + momentum * ch_max
    return x / new_rm[None, :, None, None], new_rm


if __name__ == "__main__":
    value, eps, momentum = 2.0, 0.01, 0.01

    def check(shape, use_fused):
        N, C, H, W = shape
        x = jax.random.normal(jax.random.PRNGKey(0), shape, dtype=jnp.float32)
        running_max = jnp.ones((C,), dtype=jnp.float32)   # buffer init = ones
        out, new_rm = norm_absmax2d(x, running_max, value=value, eps=eps,
                                    momentum=momentum, training=True,
                                    use_fused=use_fused)
        out = jax.block_until_ready(out)
        new_rm = jax.block_until_ready(new_rm)
        ref_out, ref_rm = _reference(x, running_max, value, eps, momentum)
        assert jnp.allclose(new_rm, ref_rm, atol=1e-6, rtol=1e-6), shape
        assert jnp.allclose(out, ref_out, atol=1e-5, rtol=1e-5), shape

    # Fused single-pass path (small activation, 2x HBM traffic).
    check((2, 4, 16, 16), True)
    # Two-pass path, lane-aligned HW (streams 128-lane chunks in pass 1).
    check((2, 4, 16, 16), False)
    # Two-pass path, small non-lane-aligned HW (whole-tile reduce in pass 1).
    check((2, 4, 5, 5), False)

    print("KERNEL_OK")
</pallas_src>

<mosaic_0001>
module attributes {stable_mosaic.version = 11 : i64} {
  func.func @_fused_kernel(%arg0: i32, %arg1: memref<2x4x256xf32, #tpu.memory_space<vmem>>, %arg2: memref<4x1xf32, #tpu.memory_space<vmem>>, %arg3: memref<2x4x256xf32, #tpu.memory_space<vmem>>, %arg4: memref<4x1xf32, #tpu.memory_space<vmem>>) attributes {dimension_semantics = [#tpu.dimension_semantics<arbitrary>], iteration_bounds = array<i64: 1>, scalar_prefetch = 0 : i64, scratch_operands = 0 : i64, tpu.core_type = #tpu.core_type<tc>, window_params = [{pipeline_mode = #tpu.pipeline_mode<synchronous>, transform_indices = @transform_0, window_bounds = array<i64: 2, 4, 256>}, {pipeline_mode = #tpu.pipeline_mode<synchronous>, transform_indices = @transform_1, window_bounds = array<i64: 4, 1>}, {pipeline_mode = #tpu.pipeline_mode<synchronous>, transform_indices = @transform_2, window_bounds = array<i64: 2, 4, 256>}, {pipeline_mode = #tpu.pipeline_mode<synchronous>, transform_indices = @transform_3, window_bounds = array<i64: 4, 1>}]} {
    %c0 = arith.constant 0 : index
    %c0_0 = arith.constant 0 : index
    %c0_1 = arith.constant 0 : index
    %0 = vector.load %arg1[%c0, %c0_0, %c0_1] : memref<2x4x256xf32, #tpu.memory_space<vmem>>, vector<2x4x256xf32>
    %c0_2 = arith.constant 0 : index
    %c0_3 = arith.constant 0 : index
    %1 = vector.load %arg2[%c0_2, %c0_3] : memref<4x1xf32, #tpu.memory_space<vmem>>, vector<4x1xf32>
    %2 = math.absf %0 : vector<2x4x256xf32>
    %cst = arith.constant dense<0xFF800000> : vector<4x256xf32>
    %3 = vector.multi_reduction <maximumf>, %2, %cst [0] : vector<2x4x256xf32> to vector<4x256xf32>
    %cst_4 = arith.constant dense<0xFF800000> : vector<4xf32>
    %4 = vector.multi_reduction <maximumf>, %3, %cst_4 [1] : vector<4x256xf32> to vector<4xf32>
    %5 = vector.shape_cast %4 : vector<4xf32> to vector<4x1xf32>
    %cst_5 = arith.constant 2.000000e+00 : f32
    %6 = vector.broadcast %cst_5 : f32 to vector<4x1xf32>
    %7 = arith.divf %5, %6 : vector<4x1xf32>
    %cst_6 = arith.constant 0.00999999977 : f32
    %8 = vector.broadcast %cst_6 : f32 to vector<4x1xf32>
    %9 = arith.maximumf %7, %8 : vector<4x1xf32>
    %cst_7 = arith.constant 9.900000e-01 : f32
    %10 = vector.broadcast %cst_7 : f32 to vector<4x1xf32>
    %11 = arith.mulf %1, %10 : vector<4x1xf32>
    %cst_8 = arith.constant 0.00999999977 : f32
    %12 = vector.broadcast %cst_8 : f32 to vector<4x1xf32>
    %13 = arith.mulf %12, %9 : vector<4x1xf32>
    %14 = arith.addf %11, %13 : vector<4x1xf32>
    %c0_9 = arith.constant 0 : index
    %c0_10 = arith.constant 0 : index
    %15 = vector.load %arg4[%c0_9, %c0_10] : memref<4x1xf32, #tpu.memory_space<vmem>>, vector<4x1xf32>
    tpu.vector_store %arg4[%c0_9, %c0_10], %14 {strides = array<i32>} : memref<4x1xf32, #tpu.memory_space<vmem>>, vector<4x1xf32>,
    %cst_11 = arith.constant 1.000000e+00 : f32
    %16 = vector.broadcast %cst_11 : f32 to vector<4x1xf32>
    %17 = arith.divf %16, %14 : vector<4x1xf32>
    %18 = vector.shape_cast %17 : vector<4x1xf32> to vector<1x4x1xf32>
    %19 = vector.broadcast %18 : vector<1x4x1xf32> to vector<2x4x256xf32>
    %20 = arith.mulf %0, %19 : vector<2x4x256xf32>
    %c0_12 = arith.constant 0 : index
    %c0_13 = arith.constant 0 : index
    %c0_14 = arith.constant 0 : index
    %21 = vector.load %arg3[%c0_12, %c0_13, %c0_14] : memref<2x4x256xf32, #tpu.memory_space<vmem>>, vector<2x4x256xf32>
    tpu.vector_store %arg3[%c0_12, %c0_13, %c0_14], %20 {strides = array<i32>} : memref<2x4x256xf32, #tpu.memory_space<vmem>>, vector<2x4x256xf32>,
    return
  }
  func.func @transform_0(%arg0: i32) -> (i32, i32, i32) {
    %c0_i32 = arith.constant 0 : i32
    %c0_i32_0 = arith.constant 0 : i32
    %c0_i32_1 = arith.constant 0 : i32
    %c0_i32_2 = arith.constant 0 : i32
    return %c0_i32, %c0_i32_0, %c0_i32_1 : i32, i32, i32
  }
  func.func @transform_1(%arg0: i32) -> (i32, i32) {
    %c0_i32 = arith.constant 0 : i32
    %c0_i32_0 = arith.constant 0 : i32
    %c0_i32_1 = arith.constant 0 : i32
    return %c0_i32, %c0_i32_0 : i32, i32
  }
  func.func @transform_2(%arg0: i32) -> (i32, i32, i32) {
    %c0_i32 = arith.constant 0 : i32
    %c0_i32_0 = arith.constant 0 : i32
    %c0_i32_1 = arith.constant 0 : i32
    %c0_i32_2 = arith.constant 0 : i32
    return %c0_i32, %c0_i32_0, %c0_i32_1 : i32, i32, i32
  }
  func.func @transform_3(%arg0: i32) -> (i32, i32) {
    %c0_i32 = arith.constant 0 : i32
    %c0_i32_0 = arith.constant 0 : i32
    %c0_i32_1 = arith.constant 0 : i32
    return %c0_i32, %c0_i32_0 : i32, i32
  }
}

</mosaic_0001>

<llo_original>
// kernel: tpu_custom_call.1
$region0: #{tpu_custom_call.1}
  #allocation0 [shape = 'u32[]', space=smem, size = 0x4, offset = 0x4, fixed_abs, tag = 'smem constant byte address 0x4 - core index']
  #allocation1 [shape = 'u32[144,128]{1,0:T(1,128)}', space=vmem, size = 0x12000, scoped, tag = 'internal scratch']
  %s0 = inlined_call_operand.hbm [shape: f32[2,4,256], index: 0, kind: input, shape index: {}]
  %s1 = inlined_call_operand.vmem [shape: f32[4,1], index: 1, kind: input, shape index: {}]
  %s2 = inlined_call_operand.hbm [shape: f32[2,4,256], index: 2, kind: output, shape index: {0}]
  %s3 = inlined_call_operand.vmem [shape: f32[4,1], index: 3, kind: output, shape index: {1}]
  %4 = xla_tuple %s2, %s3
  %s5 = sld [smem:[#allocation0]]
  $region30: #{tpu_custom_call.1} parent=0
    _
  %s7 = ssub.s32 1, %s5
  %s8 = scalar_select 0, %s7, %s5
  $region1: #{tpu_custom_call.1} parent=0
    #allocation2 [shape = 'u8[8192]{0}', space=vmem, size = 0x2000, scoped, tag = 'input window, operand 0, single buffered']
    #allocation3 [shape = 's32[1]{0}', space=sflag, size = 0x4, scoped, tag = 'scoped memory for tpu_custom_call.1']
    #allocation4 [shape = 's32[1]{0}', space=sflag, size = 0x4, scoped, tag = 'scoped memory for tpu_custom_call.1']
    #allocation5 [shape = 'u8[8192]{0}', space=vmem, size = 0x2000, scoped, tag = 'output window, operand 0, single buffered']
    %9 = vsyncpa [#allocation3], 0
    %10 = vsyncpa [#allocation4], 0
    // Predicated region
    $region2: #{tpu_custom_call.1} parent=1 // pred_check
      _
    $region3: #{tpu_custom_call.1} parent=1 // pred_check_branch
      %12 = sbr.rel (0) target = $region5
    $region4: #{tpu_custom_call.1} parent=1 // pred_region
      %s14 = ssub.s32 256, 256
      %15 = vsyncadd [#allocation3], %s14
      %s16 = sshll.u32 [#allocation2], 4
      %s17 = int_to_ptr.vmem [resolvable:$true] %s16
      %22 = dma.hbm_to_vmem [thread:$0]  %s0, 256, %s17, [#allocation3], 128, 128, 8
    $region5: #{tpu_custom_call.1} parent=1 // pred_fallthru
      _
    // Predicated region
    $region6: #{tpu_custom_call.1} parent=1 // pred_check
      _
    $region7: #{tpu_custom_call.1} parent=1 // pred_check_branch
      %24 = sbr.rel (0) target = $region9
    $region8: #{tpu_custom_call.1} parent=1 // pred_region
      _
    $region9: #{tpu_custom_call.1} parent=1 // pred_fallthru
      _
    // Predicated region
    $region10: #{tpu_custom_call.1} parent=1 // pred_check
      _
    $region11: #{tpu_custom_call.1} parent=1 // pred_check_branch
      %26 = sbr.rel (0) target = $region13
    $region12: #{tpu_custom_call.1} parent=1 // pred_region
      %27 = dma.done [#allocation3], 256
    $region13: #{tpu_custom_call.1} parent=1 // pred_fallthru
      _
    %v28 = vld [vmem:[#allocation2] sm:$0xff]
    %v29 = vld [vmem:[#allocation2 + $0x8] sm:$0xff]
    %v30 = vld [vmem:[%s1] sm:$0xf]
    %v31 = vand.u32 2147483647, %v28
    %v32 = vand.u32 2147483647, %v29
    %v33 = vmax.f32 %v31, %v32
    %v35 = vcombine.high %v33, %v33
    %vm37 = vcmask 1043456
    %v38 = vsel %vm37, %v33, -inf
    %v39 = vsel %vm37, %v35, -inf
    %v40 = vmax.f32 %v38, %v39
    %41 = vmax.xlane.f32.xlu0 %v40
    %v42 = vpop.xlane.xlu0 %41
    %v43 = vrcp.pop 2.0
    %v44 = vmul.f32 %v42, %v43
    %v45 = vmax.f32 %v44, 0.01
    %v46 = vmul.f32 %v30, 0.99
    %v47 = vmul.f32 %v45, 0.01
    %v48 = vadd.f32 %v46, %v47
    %vm49 = vcmask 3072
    %50 = vst.msk [vmem:[%s3] sm:$0xf] %vm49, %v48
    %v51 = vrcp.pop %v48
    %v52 = vmul.f32 1.0, %v51
    %54 = vset.pattern.permute.xlu0 0
    %55 = vperm.xlu0 %54, %v52
    %v56 = vpop.permute.xlu0 %55
    %v58 = vunpack.c.l.s4 839922192
    %v59 = vunpack.c.0.s8 %v58
    %v60 = vlaneseq
    %v61 = vshrl.u32 %v60, 7
    %v62 = vsub.s32 %v59, %v61
    %v63 = vrot.slane %v56, %v62
    %v65 = vmul.f32 %v28, %v63
    %v66 = vmul.f32 %v29, %v63
    %67 = vst [vmem:[#allocation5] sm:$0xff] %v65
    %68 = vst [vmem:[#allocation5 + $0x8] sm:$0xff] %v66
    // Predicated region
    $region14: #{tpu_custom_call.1} parent=1 // pred_check
      _
    $region15: #{tpu_custom_call.1} parent=1 // pred_check_branch
      %70 = sbr.rel (0) target = $region17
    $region16: #{tpu_custom_call.1} parent=1 // pred_region
      %s72 = ssub.s32 256, 256
      %73 = vsyncadd [#allocation4], %s72
      %s74 = sshll.u32 [#allocation5], 4
      %s75 = int_to_ptr.vmem [resolvable:$true] %s74
      %80 = dma.vmem_to_hbm [thread:$0]  %s75, 256, %s2, [#allocation4], 128, 128, 8
    $region17: #{tpu_custom_call.1} parent=1 // pred_fallthru
      _
    // Predicated region
    $region18: #{tpu_custom_call.1} parent=1 // pred_check
      _
    $region19: #{tpu_custom_call.1} parent=1 // pred_check_branch
      %82 = sbr.rel (0) target = $region21
    $region20: #{tpu_custom_call.1} parent=1 // pred_region
      _
    $region21: #{tpu_custom_call.1} parent=1 // pred_fallthru
      _
    // Predicated region
    $region22: #{tpu_custom_call.1} parent=1 // pred_check
      _
    $region23: #{tpu_custom_call.1} parent=1 // pred_check_branch
      %84 = sbr.rel (0) target = $region25
    $region24: #{tpu_custom_call.1} parent=1 // pred_region
      %85 = dma.done [#allocation4], 256
    $region25: #{tpu_custom_call.1} parent=1 // pred_fallthru
      _
    // Predicated region
    $region26: #{tpu_custom_call.1} parent=1 // pred_check
      _
    $region27: #{tpu_custom_call.1} parent=1 // pred_check_branch
      %87 = sbr.rel (0) target = $region29
    $region28: #{tpu_custom_call.1} parent=1 // pred_region
      _
    $region29: #{tpu_custom_call.1} parent=1 // pred_fallthru
      _
    %88 = vsyncpa [#allocation3], 1
    %89 = vsyncpa [#allocation4], 1

</llo_original>
